<compile_context>
chip_gen: v6e
topology: v6e:2x2x1
jax: 0.10.0
libtpu: 0.0.40
codegen_flags: <defaults>
</compile_context>

<pallas_src>
import functools

import jax
import jax.numpy as jnp
import numpy as np
from jax.experimental import pallas as pl
from jax.experimental.pallas import tpu as pltpu


def _template_bank_kernel(c_ref, t_ref, o_ref, *, num_templates):
    """One lane-dense tile of the weighted template sum.

    c_ref: SMEM (T,)      -- per-template scalar coefficients
    t_ref: VMEM (T, TD)   -- flattened template tile (T sublane rows)
    o_ref: VMEM (1, TD)   -- flattened output-weights tile
    """
    acc = jnp.zeros(o_ref.shape, jnp.float32)
    # T is small and static -> fully unrolled VPU multiply-add chain.
    for t in range(num_templates):
        acc = acc + c_ref[t] * t_ref[pl.ds(t, 1), :].astype(jnp.float32)
    o_ref[...] = acc.astype(o_ref.dtype)


def template_bank_forward(templates, coefficients):
    """Pallas forward for TemplateBank: (templates * coefficients).sum(0)."""
    T, O, I, K, K2 = templates.shape
    assert K == K2
    assert coefficients.shape in ((T, 1, 1, 1, 1), (T,))
    D = O * I * K * K

    # Layout plumbing: flatten per-template weights so the last dim is
    # lane-dense; coefficients become a flat scalar table for SMEM.
    t2d = templates.reshape(T, D)
    c1d = coefficients.reshape(T).astype(jnp.float32)

    elem = t2d.dtype.itemsize
    # Per-buffer cap; x2 double-buffering keeps the tile well under the v7x
    # 64 MiB physical / 32 MiB default-scoped VMEM budget.
    max_block_bytes = 8 * 1024 * 1024
    if T * D * elem <= max_block_bytes:
        TD = D  # single full block (full-array-dim exception to the 128 rule)
    else:
        TD = max(128, ((max_block_bytes // (T * elem)) // 128) * 128)
    grid = (pl.cdiv(D, TD),)

    kernel = functools.partial(_template_bank_kernel, num_templates=T)

    out2d = pl.pallas_call(
        kernel,
        out_shape=jax.ShapeDtypeStruct((1, D), templates.dtype),
        grid=grid,
        in_specs=[
            # Tiny coefficient table -> SMEM, scalar reads.
            pl.BlockSpec(memory_space=pltpu.MemorySpace.SMEM),
            # Lane-dense template tile: all T rows, TD lanes per grid step.
            pl.BlockSpec((T, TD), lambda j: (0, j)),
        ],
        out_specs=pl.BlockSpec((1, TD), lambda j: (0, j)),
        compiler_params=pltpu.CompilerParams(
            dimension_semantics=("parallel",)),
        cost_estimate=pl.CostEstimate(
            flops=2 * T * D,
            transcendentals=0,
            bytes_accessed=(T * D + D) * elem + T * 4),
    )(c1d, t2d)

    return out2d.reshape(O, I, K, K)


if __name__ == "__main__":
    # Small shapes consistent with the module:
    # TemplateBank(num_templates=4, in_planes=4, out_planes=8, kernel_size=3)
    num_templates, in_planes, out_planes, K = 4, 4, 8, 3

    key = jax.random.PRNGKey(0)
    k1, k2 = jax.random.split(key)

    # kaiming_normal_-style init for the templates (fan_in = in_planes*K*K).
    fan_in = in_planes * K * K
    templates = jax.random.normal(
        k1, (num_templates, out_planes, in_planes, K, K), dtype=jnp.float32
    ) * np.sqrt(2.0 / fan_in)
    coefficients = jax.random.normal(
        k2, (num_templates, 1, 1, 1, 1), dtype=jnp.float32)

    out = template_bank_forward(templates, coefficients)
    out = jax.block_until_ready(out)

    # Reference: plain JAX weighted sum (matches the PyTorch forward).
    ref = jnp.sum(templates * coefficients, axis=0)

    assert out.shape == (out_planes, in_planes, K, K)
    np.testing.assert_allclose(np.asarray(out), np.asarray(ref),
                               rtol=1e-5, atol=1e-6)
    print("KERNEL_OK")
</pallas_src>

<mosaic_0001>
module attributes {stable_mosaic.version = 11 : i64} {
  func.func @_template_bank_kernel(%arg0: i32, %arg1: memref<4xf32, #tpu.memory_space<smem>>, %arg2: memref<4x288xf32, #tpu.memory_space<vmem>>, %arg3: memref<1x288xf32, #tpu.memory_space<vmem>>) attributes {dimension_semantics = [#tpu.dimension_semantics<parallel>], iteration_bounds = array<i64: 1>, scalar_prefetch = 0 : i64, scratch_operands = 0 : i64, tpu.core_type = #tpu.core_type<tc>, window_params = [{transform_indices = @transform_0, window_bounds = array<i64: 4>}, {transform_indices = @transform_1, window_bounds = array<i64: 4, 288>}, {transform_indices = @transform_2, window_bounds = array<i64: 1, 288>}]} {
    %cst = arith.constant 0.000000e+00 : f32
    %0 = vector.broadcast %cst : f32 to vector<1x288xf32>
    %c0 = arith.constant 0 : index
    %1 = memref.load %arg1[%c0] : memref<4xf32, #tpu.memory_space<smem>>
    %c0_0 = arith.constant 0 : index
    %c0_1 = arith.constant 0 : index
    %2 = vector.load %arg2[%c0_0, %c0_1] : memref<4x288xf32, #tpu.memory_space<vmem>>, vector<1x288xf32>
    %3 = vector.broadcast %1 : f32 to vector<1x288xf32>
    %4 = arith.mulf %3, %2 : vector<1x288xf32>
    %5 = arith.addf %0, %4 : vector<1x288xf32>
    %c1 = arith.constant 1 : index
    %6 = memref.load %arg1[%c1] : memref<4xf32, #tpu.memory_space<smem>>
    %c1_2 = arith.constant 1 : index
    %c0_3 = arith.constant 0 : index
    %7 = vector.load %arg2[%c1_2, %c0_3] : memref<4x288xf32, #tpu.memory_space<vmem>>, vector<1x288xf32>
    %8 = vector.broadcast %6 : f32 to vector<1x288xf32>
    %9 = arith.mulf %8, %7 : vector<1x288xf32>
    %10 = arith.addf %5, %9 : vector<1x288xf32>
    %c2 = arith.constant 2 : index
    %11 = memref.load %arg1[%c2] : memref<4xf32, #tpu.memory_space<smem>>
    %c2_4 = arith.constant 2 : index
    %c0_5 = arith.constant 0 : index
    %12 = vector.load %arg2[%c2_4, %c0_5] : memref<4x288xf32, #tpu.memory_space<vmem>>, vector<1x288xf32>
    %13 = vector.broadcast %11 : f32 to vector<1x288xf32>
    %14 = arith.mulf %13, %12 : vector<1x288xf32>
    %15 = arith.addf %10, %14 : vector<1x288xf32>
    %c3 = arith.constant 3 : index
    %16 = memref.load %arg1[%c3] : memref<4xf32, #tpu.memory_space<smem>>
    %c3_6 = arith.constant 3 : index
    %c0_7 = arith.constant 0 : index
    %17 = vector.load %arg2[%c3_6, %c0_7] : memref<4x288xf32, #tpu.memory_space<vmem>>, vector<1x288xf32>
    %18 = vector.broadcast %16 : f32 to vector<1x288xf32>
    %19 = arith.mulf %18, %17 : vector<1x288xf32>
    %20 = arith.addf %15, %19 : vector<1x288xf32>
    %c0_8 = arith.constant 0 : index
    %c0_9 = arith.constant 0 : index
    %21 = vector.load %arg3[%c0_8, %c0_9] : memref<1x288xf32, #tpu.memory_space<vmem>>, vector<1x288xf32>
    tpu.vector_store %arg3[%c0_8, %c0_9], %20 {strides = array<i32>} : memref<1x288xf32, #tpu.memory_space<vmem>>, vector<1x288xf32>,
    return
  }
  func.func @transform_0(%arg0: i32) -> i32 {
    %c0_i32 = arith.constant 0 : i32
    %c0_i32_0 = arith.constant 0 : i32
    return %c0_i32 : i32
  }
  func.func @transform_1(%arg0: i32) -> (i32, i32) {
    %c0_i32 = arith.constant 0 : i32
    %c0_i32_0 = arith.constant 0 : i32
    return %c0_i32, %arg0 : i32, i32
  }
  func.func @transform_2(%arg0: i32) -> (i32, i32) {
    %c0_i32 = arith.constant 0 : i32
    %c0_i32_0 = arith.constant 0 : i32
    return %c0_i32, %arg0 : i32, i32
  }
}

</mosaic_0001>

<llo_original>
// kernel: tpu_custom_call.1
$region0: #{tpu_custom_call.1}
  #allocation0 [shape = 'u32[]', space=smem, size = 0x4, offset = 0x4, fixed_abs, tag = 'smem constant byte address 0x4 - core index']
  #allocation1 [shape = 'u32[144,128]{1,0:T(1,128)}', space=vmem, size = 0x12000, scoped, tag = 'internal scratch']
  %s0 = inlined_call_operand.hbm [shape: f32[4], index: 0, kind: input, shape index: {}]
  %s1 = inlined_call_operand.hbm [shape: f32[4,288], index: 1, kind: input, shape index: {}]
  %s2 = inlined_call_operand.hbm [shape: f32[1,288], index: 2, kind: output, shape index: {}]
  %s3 = sld [smem:[#allocation0]]
  $region26: #{tpu_custom_call.1} parent=0
    _
  %s5 = ssub.s32 1, %s3
  %s6 = scalar_select 0, %s5, %s3
  $region1: #{tpu_custom_call.1} parent=0
    #allocation2 [shape = 'u8[512]{0}', space=smem, size = 0x200, scoped, tag = 'input window, operand 0, single buffered']
    #allocation3 [shape = 's32[1]{0}', space=sflag, size = 0x4, scoped, tag = 'scoped memory for tpu_custom_call.1']
    #allocation4 [shape = 's32[1]{0}', space=sflag, size = 0x4, scoped, tag = 'scoped memory for tpu_custom_call.1']
    #allocation5 [shape = 's32[1]{0}', space=sflag, size = 0x4, scoped, tag = 'scoped memory for tpu_custom_call.1']
    #allocation6 [shape = 'u8[6144]{0}', space=vmem, size = 0x1800, scoped, tag = 'input window, operand 1, single buffered']
    #allocation7 [shape = 'u8[1536]{0}', space=vmem, size = 0x800, scoped, tag = 'output window, operand 0, single buffered']
    %7 = vsyncpa [#allocation5], 0
    %8 = vsyncpa [#allocation3], 0
    %9 = vsyncpa [#allocation4], 0
    // Predicated region
    $region2: #{tpu_custom_call.1} parent=1 // pred_check
      _
    $region3: #{tpu_custom_call.1} parent=1 // pred_check_branch
      %11 = sbr.rel (0) target = $region5
    $region4: #{tpu_custom_call.1} parent=1 // pred_region
      %s13 = ssub.s32 16, 16
      %14 = vsyncadd [#allocation5], %s13
      %17 = dma.hbm_to_smem %s0, 16, [#allocation2], [#allocation5]
    $region5: #{tpu_custom_call.1} parent=1 // pred_fallthru
      _
    // Predicated region
    $region6: #{tpu_custom_call.1} parent=1 // pred_check
      _
    $region7: #{tpu_custom_call.1} parent=1 // pred_check_branch
      %19 = sbr.rel (0) target = $region9
    $region8: #{tpu_custom_call.1} parent=1 // pred_region
      %s21 = ssub.s32 192, 192
      %22 = vsyncadd [#allocation3], %s21
      %s24 = sshll.u32 [#allocation6], 4
      %s25 = int_to_ptr.vmem [resolvable:$true] %s24
      %27 = dma.hbm_to_vmem [thread:$0]  %s1, 192, %s25, [#allocation3]
    $region9: #{tpu_custom_call.1} parent=1 // pred_fallthru
      _
    // Predicated region
    $region10: #{tpu_custom_call.1} parent=1 // pred_check
      _
    $region11: #{tpu_custom_call.1} parent=1 // pred_check_branch
      %29 = sbr.rel (0) target = $region13
    $region12: #{tpu_custom_call.1} parent=1 // pred_region
      %30 = dma.done [#allocation5], 16
    $region13: #{tpu_custom_call.1} parent=1 // pred_fallthru
      _
    // Predicated region
    $region14: #{tpu_custom_call.1} parent=1 // pred_check
      _
    $region15: #{tpu_custom_call.1} parent=1 // pred_check_branch
      %32 = sbr.rel (0) target = $region17
    $region16: #{tpu_custom_call.1} parent=1 // pred_region
      %33 = dma.done [#allocation3], 192
    $region17: #{tpu_custom_call.1} parent=1 // pred_fallthru
      _
    %34 = sfence
    %s35 = sld [smem:[#allocation2]]
    %v36 = vld [vmem:[#allocation6] ss:$4 sm:$0x7]
    %v37 = vstv %s35
    %v38 = vmul.f32 %v37, %v36
    %v39 = vadd.f32 %v38, 0.0
    %s40 = sld [smem:[#allocation2 + $0x1]]
    %s41 = scalar_lea.vmem [#allocation6], 1
    %v42 = vld [vmem:[%s41] ss:$4 sm:$0x7]
    %v43 = vstv %s40
    %v44 = vmul.f32 %v43, %v42
    %v45 = vadd.f32 %v39, %v44
    %s46 = sld [smem:[#allocation2 + $0x2]]
    %s47 = scalar_lea.vmem [#allocation6], 2
    %v48 = vld [vmem:[%s47] ss:$4 sm:$0x7]
    %v49 = vstv %s46
    %v50 = vmul.f32 %v49, %v48
    %v51 = vadd.f32 %v45, %v50
    %s52 = sld [smem:[#allocation2 + $0x3]]
    %s53 = scalar_lea.vmem [#allocation6], 3
    %v54 = vld [vmem:[%s53] ss:$4 sm:$0x7]
    %v55 = vstv %s52
    %v56 = vmul.f32 %v55, %v54
    %v57 = vadd.f32 %v51, %v56
    %v58 = vlaneseq
    %vm59 = vcmp.ge.s32.totalorder %v58, 0
    %vm60 = vcmp.lt.s32.totalorder %v58, 288
    %vm61 = vmand %vm59, %vm60
    %62 = vst.msk [vmem:[#allocation7] sm:$0x7] %vm61, %v57
    // Predicated region
    $region18: #{tpu_custom_call.1} parent=1 // pred_check
      _
    $region19: #{tpu_custom_call.1} parent=1 // pred_check_branch
      %64 = sbr.rel (0) target = $region21
    $region20: #{tpu_custom_call.1} parent=1 // pred_region
      %s66 = ssub.s32 48, 48
      %67 = vsyncadd [#allocation4], %s66
      %s69 = sshll.u32 [#allocation7], 4
      %s70 = int_to_ptr.vmem [resolvable:$true] %s69
      %72 = dma.vmem_to_hbm [thread:$0]  %s70, 48, %s2, [#allocation4]
    $region21: #{tpu_custom_call.1} parent=1 // pred_fallthru
      _
    // Predicated region
    $region22: #{tpu_custom_call.1} parent=1 // pred_check
      _
    $region23: #{tpu_custom_call.1} parent=1 // pred_check_branch
      %74 = sbr.rel (0) target = $region25
    $region24: #{tpu_custom_call.1} parent=1 // pred_region
      %75 = dma.done [#allocation4], 48
    $region25: #{tpu_custom_call.1} parent=1 // pred_fallthru
      _
    %76 = vsyncpa [#allocation3], 1
    %77 = vsyncpa [#allocation4], 1
    %78 = vsyncpa [#allocation5], 1

</llo_original>
